<compile_context>
chip_gen: v6e
topology: v6e:2x2x1
jax: 0.10.0
libtpu: 0.0.40
codegen_flags: <defaults>
</compile_context>

<pallas_src>
import jax
import jax.numpy as jnp
from jax import lax
from jax.experimental import pallas as pl
from jax.experimental.pallas import tpu as pltpu


def genetic_forward_kernel(
    x_ref,                   # [B, num_inputs]
    w0_ref, b0_ref,          # shared trunk            [NI, H0], [1, H0]
    whid_ref, bhid_ref,      # fused actor|critic hid  [H0, 2*H1], [1, 2*H1]
    whead_ref, bhead_ref,    # block-diag fused heads  [2*H1, NO+1], [1, NO+1]
    out_ref,                 # [B, NO+1]  = policies || value
):
    x = x_ref[...]

    # Shared trunk: Linear + ReLU
    h = jnp.dot(x, w0_ref[...], preferred_element_type=jnp.float32) + b0_ref[...]
    h = jnp.maximum(h, 0.0)

    # Fused actor+critic hidden layer: one matmul, ReLU applies elementwise to both halves.
    hid = jnp.dot(h, whid_ref[...], preferred_element_type=jnp.float32) + bhid_ref[...]
    hid = jnp.maximum(hid, 0.0)

    # Fused heads (block-diagonal weight): columns [0:NO] are actor logits, column NO is value.
    z = jnp.dot(hid, whead_ref[...], preferred_element_type=jnp.float32) + bhead_ref[...]

    num_out = z.shape[-1] - 1
    col = lax.broadcasted_iota(jnp.int32, z.shape, 1)
    is_logit = col < num_out

    # Stable softmax over the logit columns only; value column passes through untouched.
    zm = jnp.where(is_logit, z, -1e30)
    m = jnp.max(zm, axis=-1, keepdims=True)
    e = jnp.exp(zm - m)
    denom = jnp.sum(e, axis=-1, keepdims=True)
    probs = e * pl.reciprocal(denom, approx=True)

    out_ref[...] = jnp.where(is_logit, probs, z)


def genetic_model_forward(x, params):
    """Population-batched actor/critic forward pass in one Pallas kernel.

    x:      [P, B, num_inputs] float32 (P population members, B rows each)
    params: dict of per-member weights [P, in, out] and biases [P, 1, out]
    Returns (policies [P, B, num_outputs], values [P, B, 1]).
    """
    P, B, NI = x.shape
    H0 = params["w0"].shape[-1]
    H1 = params["wa1"].shape[-1]
    NO = params["wa2"].shape[-1]

    # Fuse the actor/critic hidden layers along the output axis.
    w_hid = jnp.concatenate([params["wa1"], params["wc1"]], axis=-1)   # [P, H0, 2*H1]
    b_hid = jnp.concatenate([params["ba1"], params["bc1"]], axis=-1)   # [P, 1, 2*H1]

    # Block-diagonal fused head: logits from the actor half, value from the critic half.
    w_head = jnp.zeros((P, 2 * H1, NO + 1), jnp.float32)
    w_head = w_head.at[:, :H1, :NO].set(params["wa2"])
    w_head = w_head.at[:, H1:, NO:].set(params["wc2"])
    b_head = jnp.concatenate([params["ba2"], params["bc2"]], axis=-1)  # [P, 1, NO+1]

    def member_spec(shape2d):
        # Population dim squeezed out of the kernel ref; one member per grid step.
        return pl.BlockSpec((None,) + shape2d, lambda p: (p, 0, 0))

    fused = pl.pallas_call(
        genetic_forward_kernel,
        grid=(P,),
        in_specs=[
            member_spec((B, NI)),
            member_spec((NI, H0)), member_spec((1, H0)),
            member_spec((H0, 2 * H1)), member_spec((1, 2 * H1)),
            member_spec((2 * H1, NO + 1)), member_spec((1, NO + 1)),
        ],
        out_specs=member_spec((B, NO + 1)),
        out_shape=jax.ShapeDtypeStruct((P, B, NO + 1), jnp.float32),
        compiler_params=pltpu.CompilerParams(dimension_semantics=("parallel",)),
    )(x, params["w0"], params["b0"], w_hid, b_hid, w_head, b_head)

    policies = fused[..., :NO]
    values = fused[..., NO:]
    return policies, values


def init_params(key, P, num_inputs, h0, h1, num_outputs):
    """Deterministic synthetic population-stacked parameters (nn.Linear shapes, [in,out])."""
    ks = jax.random.split(key, 10)

    def lin(kw, kb, fan_in, fan_out):
        scale = 1.0 / jnp.sqrt(jnp.float32(fan_in))
        w = jax.random.uniform(kw, (P, fan_in, fan_out), jnp.float32, -scale, scale)
        b = jax.random.uniform(kb, (P, 1, fan_out), jnp.float32, -scale, scale)
        return w, b

    w0, b0 = lin(ks[0], ks[1], num_inputs, h0)       # shared trunk
    wa1, ba1 = lin(ks[2], ks[3], h0, h1)             # actor hidden
    wa2, ba2 = lin(ks[4], ks[5], h1, num_outputs)    # actor head
    wc1, bc1 = lin(ks[6], ks[7], h0, h1)             # critic hidden
    wc2, bc2 = lin(ks[8], ks[9], h1, 1)              # critic head
    return dict(w0=w0, b0=b0, wa1=wa1, ba1=ba1, wa2=wa2, ba2=ba2,
                wc1=wc1, bc1=bc1, wc2=wc2, bc2=bc2)


def reference_forward(x, p):
    relu = lambda v: jnp.maximum(v, 0.0)
    h = relu(jnp.einsum("pbi,pio->pbo", x, p["w0"]) + p["b0"])
    a = relu(jnp.einsum("pbi,pio->pbo", h, p["wa1"]) + p["ba1"])
    logits = jnp.einsum("pbi,pio->pbo", a, p["wa2"]) + p["ba2"]
    policies = jax.nn.softmax(logits, axis=-1)
    c = relu(jnp.einsum("pbi,pio->pbo", h, p["wc1"]) + p["bc1"])
    values = jnp.einsum("pbi,pio->pbo", c, p["wc2"]) + p["bc2"]
    return policies, values


if __name__ == "__main__":
    # Config consistent with args.num_inputs=32, args.hidden_layers=[32, 32], args.num_outputs=4,
    # evaluated for a population of P=4 members with B=128 observations each.
    P, B, NUM_INPUTS, H0, H1, NUM_OUTPUTS = 4, 128, 32, 32, 32, 4

    key = jax.random.PRNGKey(0)
    kx, kp = jax.random.split(key)
    x = jax.random.normal(kx, (P, B, NUM_INPUTS), jnp.float32)
    params = init_params(kp, P, NUM_INPUTS, H0, H1, NUM_OUTPUTS)

    policies, values = genetic_model_forward(x, params)
    jax.block_until_ready((policies, values))

    ref_pol, ref_val = reference_forward(x, params)
    assert policies.shape == (P, B, NUM_OUTPUTS) and values.shape == (P, B, 1)
    # Policies use the approx (EUP) reciprocal in the softmax -> loosened tolerance.
    assert jnp.allclose(policies, ref_pol, atol=5e-3, rtol=5e-3)
    assert jnp.allclose(values, ref_val, atol=1e-4, rtol=1e-4)
    assert jnp.allclose(jnp.sum(policies, axis=-1), 1.0, atol=5e-3)

    print("KERNEL_OK")
</pallas_src>

<mosaic_0001>
module attributes {stable_mosaic.version = 11 : i64} {
  func.func @genetic_forward_kernel(%arg0: i32, %arg1: memref<1x128x32xf32, #tpu.memory_space<vmem>>, %arg2: memref<1x32x32xf32, #tpu.memory_space<vmem>>, %arg3: memref<1x1x32xf32, #tpu.memory_space<vmem>>, %arg4: memref<1x32x64xf32, #tpu.memory_space<vmem>>, %arg5: memref<1x1x64xf32, #tpu.memory_space<vmem>>, %arg6: memref<1x64x5xf32, #tpu.memory_space<vmem>>, %arg7: memref<1x1x5xf32, #tpu.memory_space<vmem>>, %arg8: memref<1x128x5xf32, #tpu.memory_space<vmem>>) attributes {dimension_semantics = [#tpu.dimension_semantics<parallel>], iteration_bounds = array<i64: 4>, scalar_prefetch = 0 : i64, scratch_operands = 0 : i64, tpu.core_type = #tpu.core_type<tc>, window_params = [{transform_indices = @transform_0, window_bounds = array<i64: 1, 128, 32>}, {transform_indices = @transform_1, window_bounds = array<i64: 1, 32, 32>}, {transform_indices = @transform_2, window_bounds = array<i64: 1, 1, 32>}, {transform_indices = @transform_3, window_bounds = array<i64: 1, 32, 64>}, {transform_indices = @transform_4, window_bounds = array<i64: 1, 1, 64>}, {transform_indices = @transform_5, window_bounds = array<i64: 1, 64, 5>}, {transform_indices = @transform_6, window_bounds = array<i64: 1, 1, 5>}, {transform_indices = @transform_7, window_bounds = array<i64: 1, 128, 5>}]} {
    %c0 = arith.constant 0 : index
    %c0_0 = arith.constant 0 : index
    %c0_1 = arith.constant 0 : index
    %0 = vector.load %arg1[%c0, %c0_0, %c0_1] : memref<1x128x32xf32, #tpu.memory_space<vmem>>, vector<1x128x32xf32>
    %1 = vector.shape_cast %0 : vector<1x128x32xf32> to vector<128x32xf32>
    %c0_2 = arith.constant 0 : index
    %c0_3 = arith.constant 0 : index
    %c0_4 = arith.constant 0 : index
    %2 = vector.load %arg2[%c0_2, %c0_3, %c0_4] : memref<1x32x32xf32, #tpu.memory_space<vmem>>, vector<1x32x32xf32>
    %3 = vector.shape_cast %2 : vector<1x32x32xf32> to vector<32x32xf32>
    %cst = arith.constant dense<0.000000e+00> : vector<128x32xf32>
    %4 = tpu.matmul %1, %3, %cst {dimension_numbers = #tpu.dot_dimension_numbers<[1], [0], [0], [1], [0, 0, 1, 1], [], []>} : vector<128x32xf32>, vector<32x32xf32>, vector<128x32xf32> -> vector<128x32xf32>
    %c0_5 = arith.constant 0 : index
    %c0_6 = arith.constant 0 : index
    %c0_7 = arith.constant 0 : index
    %5 = vector.load %arg3[%c0_5, %c0_6, %c0_7] : memref<1x1x32xf32, #tpu.memory_space<vmem>>, vector<1x1x32xf32>
    %6 = vector.shape_cast %5 : vector<1x1x32xf32> to vector<1x32xf32>
    %7 = vector.broadcast %6 : vector<1x32xf32> to vector<128x32xf32>
    %8 = arith.addf %4, %7 : vector<128x32xf32>
    %cst_8 = arith.constant 0.000000e+00 : f32
    %9 = vector.broadcast %cst_8 : f32 to vector<128x32xf32>
    %10 = arith.maximumf %8, %9 : vector<128x32xf32>
    %c0_9 = arith.constant 0 : index
    %c0_10 = arith.constant 0 : index
    %c0_11 = arith.constant 0 : index
    %11 = vector.load %arg4[%c0_9, %c0_10, %c0_11] : memref<1x32x64xf32, #tpu.memory_space<vmem>>, vector<1x32x64xf32>
    %12 = vector.shape_cast %11 : vector<1x32x64xf32> to vector<32x64xf32>
    %cst_12 = arith.constant dense<0.000000e+00> : vector<128x64xf32>
    %13 = tpu.matmul %10, %12, %cst_12 {dimension_numbers = #tpu.dot_dimension_numbers<[1], [0], [0], [1], [0, 0, 1, 1], [], []>} : vector<128x32xf32>, vector<32x64xf32>, vector<128x64xf32> -> vector<128x64xf32>
    %c0_13 = arith.constant 0 : index
    %c0_14 = arith.constant 0 : index
    %c0_15 = arith.constant 0 : index
    %14 = vector.load %arg5[%c0_13, %c0_14, %c0_15] : memref<1x1x64xf32, #tpu.memory_space<vmem>>, vector<1x1x64xf32>
    %15 = vector.shape_cast %14 : vector<1x1x64xf32> to vector<1x64xf32>
    %16 = vector.broadcast %15 : vector<1x64xf32> to vector<128x64xf32>
    %17 = arith.addf %13, %16 : vector<128x64xf32>
    %cst_16 = arith.constant 0.000000e+00 : f32
    %18 = vector.broadcast %cst_16 : f32 to vector<128x64xf32>
    %19 = arith.maximumf %17, %18 : vector<128x64xf32>
    %c0_17 = arith.constant 0 : index
    %c0_18 = arith.constant 0 : index
    %c0_19 = arith.constant 0 : index
    %20 = vector.load %arg6[%c0_17, %c0_18, %c0_19] : memref<1x64x5xf32, #tpu.memory_space<vmem>>, vector<1x64x5xf32>
    %21 = vector.shape_cast %20 : vector<1x64x5xf32> to vector<64x5xf32>
    %cst_20 = arith.constant dense<0.000000e+00> : vector<128x5xf32>
    %22 = tpu.matmul %19, %21, %cst_20 {dimension_numbers = #tpu.dot_dimension_numbers<[1], [0], [0], [1], [0, 0, 1, 1], [], []>} : vector<128x64xf32>, vector<64x5xf32>, vector<128x5xf32> -> vector<128x5xf32>
    %c0_21 = arith.constant 0 : index
    %c0_22 = arith.constant 0 : index
    %c0_23 = arith.constant 0 : index
    %23 = vector.load %arg7[%c0_21, %c0_22, %c0_23] : memref<1x1x5xf32, #tpu.memory_space<vmem>>, vector<1x1x5xf32>
    %24 = vector.shape_cast %23 : vector<1x1x5xf32> to vector<1x5xf32>
    %25 = vector.broadcast %24 : vector<1x5xf32> to vector<128x5xf32>
    %26 = arith.addf %22, %25 : vector<128x5xf32>
    %27 = tpu.iota {dimensions = array<i32: 1>} : vector<128x5xi32>
    %c4_i32 = arith.constant 4 : i32
    %28 = vector.broadcast %c4_i32 : i32 to vector<128x5xi32>
    %29 = arith.cmpi slt, %27, %28 : vector<128x5xi32>
    %cst_24 = arith.constant -1.000000e+30 : f32
    %30 = vector.broadcast %cst_24 : f32 to vector<128x5xf32>
    %31 = arith.select %29, %26, %30 : vector<128x5xi1>, vector<128x5xf32>
    %cst_25 = arith.constant dense<0xFF800000> : vector<128xf32>
    %32 = vector.multi_reduction <maximumf>, %31, %cst_25 [1] : vector<128x5xf32> to vector<128xf32>
    %33 = vector.shape_cast %32 : vector<128xf32> to vector<128x1xf32>
    %34 = vector.broadcast %33 : vector<128x1xf32> to vector<128x5xf32>
    %35 = arith.subf %31, %34 : vector<128x5xf32>
    %36 = math.exp %35 : vector<128x5xf32>
    %cst_26 = arith.constant dense<0.000000e+00> : vector<128xf32>
    %37 = vector.multi_reduction <add>, %36, %cst_26 [1] : vector<128x5xf32> to vector<128xf32>
    %38 = vector.shape_cast %37 : vector<128xf32> to vector<128x1xf32>
    %39 = tpu.reciprocal %38 {approx = true} : vector<128x1xf32> -> vector<128x1xf32>
    %40 = vector.broadcast %39 : vector<128x1xf32> to vector<128x5xf32>
    %41 = arith.mulf %36, %40 : vector<128x5xf32>
    %42 = arith.select %29, %41, %26 : vector<128x5xi1>, vector<128x5xf32>
    %c0_27 = arith.constant 0 : index
    %c0_28 = arith.constant 0 : index
    %c0_29 = arith.constant 0 : index
    %43 = vector.load %arg8[%c0_27, %c0_28, %c0_29] : memref<1x128x5xf32, #tpu.memory_space<vmem>>, vector<1x128x5xf32>
    %44 = vector.shape_cast %43 : vector<1x128x5xf32> to vector<128x5xf32>
    %45 = vector.shape_cast %42 : vector<128x5xf32> to vector<1x128x5xf32>
    tpu.vector_store %arg8[%c0_27, %c0_28, %c0_29], %45 {strides = array<i32>} : memref<1x128x5xf32, #tpu.memory_space<vmem>>, vector<1x128x5xf32>,
    return
  }
  func.func @transform_0(%arg0: i32) -> (i32, i32, i32) {
    %c0_i32 = arith.constant 0 : i32
    %c0_i32_0 = arith.constant 0 : i32
    %c0_i32_1 = arith.constant 0 : i32
    return %arg0, %c0_i32, %c0_i32_0 : i32, i32, i32
  }
  func.func @transform_1(%arg0: i32) -> (i32, i32, i32) {
    %c0_i32 = arith.constant 0 : i32
    %c0_i32_0 = arith.constant 0 : i32
    %c0_i32_1 = arith.constant 0 : i32
    return %arg0, %c0_i32, %c0_i32_0 : i32, i32, i32
  }
  func.func @transform_2(%arg0: i32) -> (i32, i32, i32) {
    %c0_i32 = arith.constant 0 : i32
    %c0_i32_0 = arith.constant 0 : i32
    %c0_i32_1 = arith.constant 0 : i32
    return %arg0, %c0_i32, %c0_i32_0 : i32, i32, i32
  }
  func.func @transform_3(%arg0: i32) -> (i32, i32, i32) {
    %c0_i32 = arith.constant 0 : i32
    %c0_i32_0 = arith.constant 0 : i32
    %c0_i32_1 = arith.constant 0 : i32
    return %arg0, %c0_i32, %c0_i32_0 : i32, i32, i32
  }
  func.func @transform_4(%arg0: i32) -> (i32, i32, i32) {
    %c0_i32 = arith.constant 0 : i32
    %c0_i32_0 = arith.constant 0 : i32
    %c0_i32_1 = arith.constant 0 : i32
    return %arg0, %c0_i32, %c0_i32_0 : i32, i32, i32
  }
  func.func @transform_5(%arg0: i32) -> (i32, i32, i32) {
    %c0_i32 = arith.constant 0 : i32
    %c0_i32_0 = arith.constant 0 : i32
    %c0_i32_1 = arith.constant 0 : i32
    return %arg0, %c0_i32, %c0_i32_0 : i32, i32, i32
  }
  func.func @transform_6(%arg0: i32) -> (i32, i32, i32) {
    %c0_i32 = arith.constant 0 : i32
    %c0_i32_0 = arith.constant 0 : i32
    %c0_i32_1 = arith.constant 0 : i32
    return %arg0, %c0_i32, %c0_i32_0 : i32, i32, i32
  }
  func.func @transform_7(%arg0: i32) -> (i32, i32, i32) {
    %c0_i32 = arith.constant 0 : i32
    %c0_i32_0 = arith.constant 0 : i32
    %c0_i32_1 = arith.constant 0 : i32
    return %arg0, %c0_i32, %c0_i32_0 : i32, i32, i32
  }
}

</mosaic_0001>

<llo_original>
// kernel: tpu_custom_call.1
$region0: #{tpu_custom_call.1}
  #allocation0 [shape = 'u32[]', space=smem, size = 0x4, offset = 0x4, fixed_abs, tag = 'smem constant byte address 0x4 - core index']
  #allocation1 [shape = 'u32[144,128]{1,0:T(1,128)}', space=vmem, size = 0x12000, scoped, tag = 'internal scratch']
  %s0 = inlined_call_operand.vmem [shape: f32[4,128,32], index: 0, kind: input, shape index: {}]
  %s1 = inlined_call_operand.vmem [shape: f32[4,32,32], index: 1, kind: input, shape index: {}]
  %s2 = inlined_call_operand.vmem [shape: f32[4,1,32], index: 2, kind: input, shape index: {}]
  %s3 = inlined_call_operand.vmem [shape: f32[4,32,64], index: 3, kind: input, shape index: {}]
  %s4 = inlined_call_operand.vmem [shape: f32[4,1,64], index: 4, kind: input, shape index: {}]
  %s5 = inlined_call_operand.vmem [shape: f32[4,64,5], index: 5, kind: input, shape index: {}]
  %s6 = inlined_call_operand.vmem [shape: f32[4,1,5], index: 6, kind: input, shape index: {}]
  %s7 = inlined_call_operand.vmem [shape: f32[4,128,5], index: 7, kind: output, shape index: {}]
  %s8 = sld [smem:[#allocation0]]
  $region61: #{tpu_custom_call.1} parent=0
    _
  %s10 = ssub.s32 1, %s8
  %s11 = scalar_select 0, %s10, %s8
  loop: start=0, step=1, limit=6
  $region2: #{tpu_custom_call.1} parent=0 // loop_pre_header
    _
  $region3: #{tpu_custom_call.1} parent=0 // loop_header
    %s13 = sphi 0, %s17
    %p14 = scmp.ge.s32.totalorder %s13, 6
    %s23 = sphi 0, %s25
    %s26 = sphi 0, %s23
    %s27 = sphi 0, %s26
    %s43 = sphi 0, %s27
    %s49 = sphi 0, %s51
    %s52 = sphi 0, %s49
    %s53 = sphi 0, %s52
    %s69 = sphi 0, %s53
    %s75 = sphi 0, %s77
    %s78 = sphi 0, %s75
    %s79 = sphi 0, %s78
    %s95 = sphi 0, %s79
    %s101 = sphi 0, %s103
    %s104 = sphi 0, %s101
    %s105 = sphi 0, %s104
    %s121 = sphi 0, %s105
    %s127 = sphi 0, %s129
    %s130 = sphi 0, %s127
    %s131 = sphi 0, %s130
    %s147 = sphi 0, %s131
    %s153 = sphi 0, %s155
    %s156 = sphi 0, %s153
    %s157 = sphi 0, %s156
    %s173 = sphi 0, %s157
    %s179 = sphi 0, %s181
    %s182 = sphi 0, %s179
    %s183 = sphi 0, %s182
    %s199 = sphi 0, %s183
    %s205 = sphi 0, %s207
    %s208 = sphi 0, %s205
    %s209 = sphi 0, %s208
    %s225 = sphi 0, %s209
  $region4: #{tpu_custom_call.1} parent=0 // loop_header_branch
    %16 = sbr.rel (%p14) target = $region8
  $region5: #{tpu_custom_call.1} parent=0 // loop_body
    %s18 = ssub.s32 %s13, 1
    %s19 = ssub.s32 %s13, 2
    %s20 = sadd.s32 %s13, 1
    %s21 = ssub.s32 %s13, %s20
    %p22 = scmp.eq.s32.totalorder %s21, 0
    %s24 = sadd.s32 %s23, 1
    %s25 = scalar_select %p22, %s23, %s24
    %p28 = pneg %p22
    %p29 = scmp.eq.s32.totalorder %s13, 3
    %p30 = por %p28, %p29
    %p31 = scmp.ne.s32.totalorder %s23, %s26
    %p32 = scmp.eq.s32.totalorder %s13, 0
    %p33 = por %p31, %p32
    %p34 = scmp.ne.s32.totalorder %s23, %s26
    %p35 = scmp.eq.s32.totalorder %s18, 3
    %p36 = por %p34, %p35
    %p37 = scmp.ne.s32.totalorder %s26, %s27
    %p38 = scmp.eq.s32.totalorder %s18, 0
    %p39 = por %p37, %p38
    %p40 = scmp.ne.s32.totalorder %s26, %s27
    %p41 = scmp.eq.s32.totalorder %s19, 3
    %p42 = por %p40, %p41
    %p44 = scmp.ne.s32.totalorder %s27, %s43
    %p45 = scmp.eq.s32.totalorder %s19, 0
    %p46 = por %p44, %p45
    %s47 = ssub.s32 %s13, %s20
    %p48 = scmp.eq.s32.totalorder %s47, 0
    %s50 = sadd.s32 %s49, 1
    %s51 = scalar_select %p48, %s49, %s50
    %p54 = pneg %p48
    %p55 = scmp.eq.s32.totalorder %s13, 3
    %p56 = por %p54, %p55
    %p57 = scmp.ne.s32.totalorder %s49, %s52
    %p58 = scmp.eq.s32.totalorder %s13, 0
    %p59 = por %p57, %p58
    %p60 = scmp.ne.s32.totalorder %s49, %s52
    %p61 = scmp.eq.s32.totalorder %s18, 3
    %p62 = por %p60, %p61
    %p63 = scmp.ne.s32.totalorder %s52, %s53
    %p64 = scmp.eq.s32.totalorder %s18, 0
    %p65 = por %p63, %p64
    %p66 = scmp.ne.s32.totalorder %s52, %s53
    %p67 = scmp.eq.s32.totalorder %s19, 3
    %p68 = por %p66, %p67
    %p70 = scmp.ne.s32.totalorder %s53, %s69
    %p71 = scmp.eq.s32.totalorder %s19, 0
    %p72 = por %p70, %p71
    %s73 = ssub.s32 %s13, %s20
    %p74 = scmp.eq.s32.totalorder %s73, 0
    %s76 = sadd.s32 %s75, 1
    %s77 = scalar_select %p74, %s75, %s76
    %p80 = pneg %p74
    %p81 = scmp.eq.s32.totalorder %s13, 3
    %p82 = por %p80, %p81
    %p83 = scmp.ne.s32.totalorder %s75, %s78
    %p84 = scmp.eq.s32.totalorder %s13, 0
    %p85 = por %p83, %p84
    %p86 = scmp.ne.s32.totalorder %s75, %s78
    %p87 = scmp.eq.s32.totalorder %s18, 3
    %p88 = por %p86, %p87
    %p89 = scmp.ne.s32.totalorder %s78, %s79
    %p90 = scmp.eq.s32.totalorder %s18, 0
    %p91 = por %p89, %p90
    %p92 = scmp.ne.s32.totalorder %s78, %s79
    %p93 = scmp.eq.s32.totalorder %s19, 3
    %p94 = por %p92, %p93
    %p96 = scmp.ne.s32.totalorder %s79, %s95
    %p97 = scmp.eq.s32.totalorder %s19, 0
    %p98 = por %p96, %p97
    %s99 = ssub.s32 %s13, %s20
    %p100 = scmp.eq.s32.totalorder %s99, 0
    %s102 = sadd.s32 %s101, 1
    %s103 = scalar_select %p100, %s101, %s102
    %p106 = pneg %p100
    %p107 = scmp.eq.s32.totalorder %s13, 3
    %p108 = por %p106, %p107
    %p109 = scmp.ne.s32.totalorder %s101, %s104
    %p110 = scmp.eq.s32.totalorder %s13, 0
    %p111 = por %p109, %p110
    %p112 = scmp.ne.s32.totalorder %s101, %s104
    %p113 = scmp.eq.s32.totalorder %s18, 3
    %p114 = por %p112, %p113
    %p115 = scmp.ne.s32.totalorder %s104, %s105
    %p116 = scmp.eq.s32.totalorder %s18, 0
    %p117 = por %p115, %p116
    %p118 = scmp.ne.s32.totalorder %s104, %s105
    %p119 = scmp.eq.s32.totalorder %s19, 3
    %p120 = por %p118, %p119
    %p122 = scmp.ne.s32.totalorder %s105, %s121
    %p123 = scmp.eq.s32.totalorder %s19, 0
    %p124 = por %p122, %p123
    %s125 = ssub.s32 %s13, %s20
    %p126 = scmp.eq.s32.totalorder %s125, 0
    %s128 = sadd.s32 %s127, 1
    %s129 = scalar_select %p126, %s127, %s128
    %p132 = pneg %p126
    %p133 = scmp.eq.s32.totalorder %s13, 3
    %p134 = por %p132, %p133
    %p135 = scmp.ne.s32.totalorder %s127, %s130
    %p136 = scmp.eq.s32.totalorder %s13, 0
    %p137 = por %p135, %p136
    %p138 = scmp.ne.s32.totalorder %s127, %s130
    %p139 = scmp.eq.s32.totalorder %s18, 3
    %p140 = por %p138, %p139
    %p141 = scmp.ne.s32.totalorder %s130, %s131
    %p142 = scmp.eq.s32.totalorder %s18, 0
    %p143 = por %p141, %p142
    %p144 = scmp.ne.s32.totalorder %s130, %s131
    %p145 = scmp.eq.s32.totalorder %s19, 3
    %p146 = por %p144, %p145
    %p148 = scmp.ne.s32.totalorder %s131, %s147
    %p149 = scmp.eq.s32.totalorder %s19, 0
    %p150 = por %p148, %p149
    %s151 = ssub.s32 %s13, %s20
    %p152 = scmp.eq.s32.totalorder %s151, 0
    %s154 = sadd.s32 %s153, 1
    %s155 = scalar_select %p152, %s153, %s154
    %p158 = pneg %p152
    %p159 = scmp.eq.s32.totalorder %s13, 3
    %p160 = por %p158, %p159
    %p161 = scmp.ne.s32.totalorder %s153, %s156
    %p162 = scmp.eq.s32.totalorder %s13, 0
    %p163 = por %p161, %p162
    %p164 = scmp.ne.s32.totalorder %s153, %s156
    %p165 = scmp.eq.s32.totalorder %s18, 3
    %p166 = por %p164, %p165
    %p167 = scmp.ne.s32.totalorder %s156, %s157
    %p168 = scmp.eq.s32.totalorder %s18, 0
    %p169 = por %p167, %p168
    %p170 = scmp.ne.s32.totalorder %s156, %s157
    %p171 = scmp.eq.s32.totalorder %s19, 3
    %p172 = por %p170, %p171
    %p174 = scmp.ne.s32.totalorder %s157, %s173
    %p175 = scmp.eq.s32.totalorder %s19, 0
    %p176 = por %p174, %p175
    %s177 = ssub.s32 %s13, %s20
    %p178 = scmp.eq.s32.totalorder %s177, 0
    %s180 = sadd.s32 %s179, 1
    %s181 = scalar_select %p178, %s179, %s180
    %p184 = pneg %p178
    %p185 = scmp.eq.s32.totalorder %s13, 3
    %p186 = por %p184, %p185
    %p187 = scmp.ne.s32.totalorder %s179, %s182
    %p188 = scmp.eq.s32.totalorder %s13, 0
    %p189 = por %p187, %p188
    %p190 = scmp.ne.s32.totalorder %s179, %s182
    %p191 = scmp.eq.s32.totalorder %s18, 3
    %p192 = por %p190, %p191
    %p193 = scmp.ne.s32.totalorder %s182, %s183
    %p194 = scmp.eq.s32.totalorder %s18, 0
    %p195 = por %p193, %p194
    %p196 = scmp.ne.s32.totalorder %s182, %s183
    %p197 = scmp.eq.s32.totalorder %s19, 3
    %p198 = por %p196, %p197
    %p200 = scmp.ne.s32.totalorder %s183, %s199
    %p201 = scmp.eq.s32.totalorder %s19, 0
    %p202 = por %p200, %p201
    %s203 = ssub.s32 %s13, %s20
    %p204 = scmp.eq.s32.totalorder %s203, 0
    %s206 = sadd.s32 %s205, 1
    %s207 = scalar_select %p204, %s205, %s206
    %p210 = pneg %p204
    %p211 = scmp.eq.s32.totalorder %s13, 3
    %p212 = por %p210, %p211
    %p213 = scmp.ne.s32.totalorder %s205, %s208
    %p214 = scmp.eq.s32.totalorder %s13, 0
    %p215 = por %p213, %p214
    %p216 = scmp.ne.s32.totalorder %s205, %s208
    %p217 = scmp.eq.s32.totalorder %s18, 3
    %p218 = por %p216, %p217
    %p219 = scmp.ne.s32.totalorder %s208, %s209
    %p220 = scmp.eq.s32.totalorder %s18, 0
    %p221 = por %p219, %p220
    %p222 = scmp.ne.s32.totalorder %s208, %s209
    %p223 = scmp.eq.s32.totalorder %s19, 3
    %p224 = por %p222, %p223
    %p226 = scmp.ne.s32.totalorder %s209, %s225
    %p227 = scmp.eq.s32.totalorder %s19, 0
    %p228 = por %p226, %p227
    %p229 = scmp.le.s32.totalorder 1, %s13
    %p230 = scmp.lt.s32.totalorder %s13, 5
    %p231 = pnand %p229, %p230
    %p232 = pneg %p231
    // Predicated region
    $region9: #{tpu_custom_call.1} parent=5 // pred_check
      _
    $region10: #{tpu_custom_call.1} parent=5 // pred_check_branch
      %234 = sbr.rel (%p231) target = $region12
    $region11: #{tpu_custom_call.1} parent=5 // pred_region
      %s235 = ssub.s32 %s13, 1
    $region12: #{tpu_custom_call.1} parent=5 // pred_fallthru
      _
    %p236 = scmp.lt.s32.totalorder %s13, 4
    // Predicated region
    $region13: #{tpu_custom_call.1} parent=5 // pred_check
      %p237 = pneg %p236
    $region14: #{tpu_custom_call.1} parent=5 // pred_check_branch
      %239 = sbr.rel (%p237) target = $region16
    $region15: #{tpu_custom_call.1} parent=5 // pred_region
      // Predicated region
      $region17: #{tpu_custom_call.1} parent=15 // pred_check
        %p240 = pneg %p33
      $region18: #{tpu_custom_call.1} parent=15 // pred_check_branch
        %242 = sbr.rel (%p240) target = $region20
      $region19: #{tpu_custom_call.1} parent=15 // pred_region
        %p243 = scmp.lt.s32.totalorder %s13, 3
        %s244 = scalar_select %p243, %s13, 3
        %s245 = smul.addr %s244, 16
        %s246 = smul.addr %s245, 8
        %s247 = scalar_lea.vmem %s0, %s246
      $region20: #{tpu_custom_call.1} parent=15 // pred_fallthru
        _
      // Predicated region
      $region21: #{tpu_custom_call.1} parent=15 // pred_check
        %p248 = pneg %p59
      $region22: #{tpu_custom_call.1} parent=15 // pred_check_branch
        %250 = sbr.rel (%p248) target = $region24
      $region23: #{tpu_custom_call.1} parent=15 // pred_region
        %p251 = scmp.lt.s32.totalorder %s13, 3
        %s252 = scalar_select %p251, %s13, 3
        %s253 = smul.addr %s252, 4
        %s254 = smul.addr %s253, 8
        %s255 = scalar_lea.vmem %s1, %s254
      $region24: #{tpu_custom_call.1} parent=15 // pred_fallthru
        _
      // Predicated region
      $region25: #{tpu_custom_call.1} parent=15 // pred_check
        %p256 = pneg %p85
      $region26: #{tpu_custom_call.1} parent=15 // pred_check_branch
        %258 = sbr.rel (%p256) target = $region28
      $region27: #{tpu_custom_call.1} parent=15 // pred_region
        %p259 = scmp.lt.s32.totalorder %s13, 3
        %s260 = scalar_select %p259, %s13, 3
        %s261 = scalar_lea.vmem %s2, %s260
      $region28: #{tpu_custom_call.1} parent=15 // pred_fallthru
        _
      // Predicated region
      $region29: #{tpu_custom_call.1} parent=15 // pred_check
        %p262 = pneg %p111
      $region30: #{tpu_custom_call.1} parent=15 // pred_check_branch
        %264 = sbr.rel (%p262) target = $region32
      $region31: #{tpu_custom_call.1} parent=15 // pred_region
        %p265 = scmp.lt.s32.totalorder %s13, 3
        %s266 = scalar_select %p265, %s13, 3
        %s267 = smul.addr %s266, 4
        %s268 = smul.addr %s267, 8
        %s269 = scalar_lea.vmem %s3, %s268
      $region32: #{tpu_custom_call.1} parent=15 // pred_fallthru
        _
      // Predicated region
      $region33: #{tpu_custom_call.1} parent=15 // pred_check
        %p270 = pneg %p137
      $region34: #{tpu_custom_call.1} parent=15 // pred_check_branch
        %272 = sbr.rel (%p270) target = $region36
      $region35: #{tpu_custom_call.1} parent=15 // pred_region
        %p273 = scmp.lt.s32.totalorder %s13, 3
        %s274 = scalar_select %p273, %s13, 3
        %s275 = scalar_lea.vmem %s4, %s274
      $region36: #{tpu_custom_call.1} parent=15 // pred_fallthru
        _
      // Predicated region
      $region37: #{tpu_custom_call.1} parent=15 // pred_check
        %p276 = pneg %p163
      $region38: #{tpu_custom_call.1} parent=15 // pred_check_branch
        %278 = sbr.rel (%p276) target = $region40
      $region39: #{tpu_custom_call.1} parent=15 // pred_region
        %p279 = scmp.lt.s32.totalorder %s13, 3
        %s280 = scalar_select %p279, %s13, 3
        %s281 = smul.addr %s280, 8
        %s282 = smul.addr %s281, 8
        %s283 = scalar_lea.vmem %s5, %s282
      $region40: #{tpu_custom_call.1} parent=15 // pred_fallthru
        _
      // Predicated region
      $region41: #{tpu_custom_call.1} parent=15 // pred_check
        %p284 = pneg %p189
      $region42: #{tpu_custom_call.1} parent=15 // pred_check_branch
        %286 = sbr.rel (%p284) target = $region44
      $region43: #{tpu_custom_call.1} parent=15 // pred_region
        %p287 = scmp.lt.s32.totalorder %s13, 3
        %s288 = scalar_select %p287, %s13, 3
        %s289 = scalar_lea.vmem %s6, %s288
      $region44: #{tpu_custom_call.1} parent=15 // pred_fallthru
        _
    $region16: #{tpu_custom_call.1} parent=5 // pred_fallthru
      _
    %p290 = scmp.le.s32.totalorder 1, %s13
    %p291 = scmp.lt.s32.totalorder %s13, 5
    %p292 = pnand %p290, %p291
    %p293 = pneg %p292
    // Predicated region
    $region45: #{tpu_custom_call.1} parent=5 // pred_check
      _
    $region46: #{tpu_custom_call.1} parent=5 // pred_check_branch
      %295 = sbr.rel (%p292) target = $region48
    $region47: #{tpu_custom_call.1} parent=5 // pred_region
      %s296 = ssub.s32 %s13, 1
      %p297 = scmp.lt.s32.totalorder %s18, 3
      %s298 = scalar_select %p297, %s18, 3
      %s299 = smul.addr %s298, 16
      %s300 = smul.addr %s299, 8
      %s301 = scalar_lea.vmem %s0, %s300
      %p302 = pneg %p39
      %p303 = pneg %p36
      %p304 = scmp.lt.s32.totalorder %s18, 3
      %s305 = scalar_select %p304, %s18, 3
      %s306 = smul.addr %s305, 4
      %s307 = smul.addr %s306, 8
      %s308 = scalar_lea.vmem %s1, %s307
      %p309 = pneg %p65
      %p310 = pneg %p62
      %p311 = scmp.lt.s32.totalorder %s18, 3
      %s312 = scalar_select %p311, %s18, 3
      %s313 = scalar_lea.vmem %s2, %s312
      %p314 = pneg %p91
      %p315 = pneg %p88
      %p316 = scmp.lt.s32.totalorder %s18, 3
      %s317 = scalar_select %p316, %s18, 3
      %s318 = smul.addr %s317, 4
      %s319 = smul.addr %s318, 8
      %s320 = scalar_lea.vmem %s3, %s319
      %p321 = pneg %p117
      %p322 = pneg %p114
      %p323 = scmp.lt.s32.totalorder %s18, 3
      %s324 = scalar_select %p323, %s18, 3
      %s325 = scalar_lea.vmem %s4, %s324
      %p326 = pneg %p143
      %p327 = pneg %p140
      %p328 = scmp.lt.s32.totalorder %s18, 3
      %s329 = scalar_select %p328, %s18, 3
      %s330 = smul.addr %s329, 8
      %s331 = smul.addr %s330, 8
      %s332 = scalar_lea.vmem %s5, %s331
      %p333 = pneg %p169
      %p334 = pneg %p166
      %p335 = scmp.lt.s32.totalorder %s18, 3
      %s336 = scalar_select %p335, %s18, 3
      %s337 = scalar_lea.vmem %s6, %s336
      %p338 = pneg %p195
      %p339 = pneg %p192
      %p340 = pneg %p221
      %p341 = pneg %p218
      %p342 = scmp.lt.s32.totalorder %s18, 3
      %s343 = scalar_select %p342, %s18, 3
      %s344 = smul.addr %s343, 16
      %s345 = smul.addr %s344, 8
      %s346 = scalar_lea.vmem %s7, %s345
      %p347 = scmp.lt.s32.totalorder %s18, 3
      %s348 = scalar_select %p347, %s18, 3
      %s349 = smul.addr %s348, 16
      %s350 = smul.addr %s349, 8
      %s351 = scalar_lea.vmem %s0, %s350
      %p352 = scmp.lt.s32.totalorder %s18, 3
      %s353 = scalar_select %p352, %s18, 3
      %s354 = smul.addr %s353, 4
      %s355 = smul.addr %s354, 8
      %s356 = scalar_lea.vmem %s1, %s355
      %p357 = scmp.lt.s32.totalorder %s18, 3
      %s358 = scalar_select %p357, %s18, 3
      %s359 = scalar_lea.vmem %s2, %s358
      %p360 = scmp.lt.s32.totalorder %s18, 3
      %s361 = scalar_select %p360, %s18, 3
      %s362 = smul.addr %s361, 4
      %s363 = smul.addr %s362, 8
      %s364 = scalar_lea.vmem %s3, %s363
      %p365 = scmp.lt.s32.totalorder %s18, 3
      %s366 = scalar_select %p365, %s18, 3
      %s367 = scalar_lea.vmem %s4, %s366
      %p368 = scmp.lt.s32.totalorder %s18, 3
      %s369 = scalar_select %p368, %s18, 3
      %s370 = smul.addr %s369, 8
      %s371 = smul.addr %s370, 8
      %s372 = scalar_lea.vmem %s5, %s371
      %p373 = scmp.lt.s32.totalorder %s18, 3
      %s374 = scalar_select %p373, %s18, 3
      %s375 = scalar_lea.vmem %s6, %s374
      %p376 = scmp.lt.s32.totalorder %s18, 3
      %s377 = scalar_select %p376, %s18, 3
      %s378 = smul.addr %s377, 16
      %s379 = smul.addr %s378, 8
      %s380 = scalar_lea.vmem %s7, %s379
      %v381 = vld [vmem:[%s351] sm:$0xff]
      %v382 = vld [vmem:[%s351 + $0x8] sm:$0xff]
      %v383 = vld [vmem:[%s351 + $0x10] sm:$0xff]
      %v384 = vld [vmem:[%s351 + $0x18] sm:$0xff]
      %v385 = vld [vmem:[%s351 + $0x20] sm:$0xff]
      %v386 = vld [vmem:[%s351 + $0x28] sm:$0xff]
      %v387 = vld [vmem:[%s351 + $0x30] sm:$0xff]
      %v388 = vld [vmem:[%s351 + $0x38] sm:$0xff]
      %v389 = vld [vmem:[%s351 + $0x40] sm:$0xff]
      %v390 = vld [vmem:[%s351 + $0x48] sm:$0xff]
      %v391 = vld [vmem:[%s351 + $0x50] sm:$0xff]
      %v392 = vld [vmem:[%s351 + $0x58] sm:$0xff]
      %v393 = vld [vmem:[%s351 + $0x60] sm:$0xff]
      %v394 = vld [vmem:[%s351 + $0x68] sm:$0xff]
      %v395 = vld [vmem:[%s351 + $0x70] sm:$0xff]
      %v396 = vld [vmem:[%s351 + $0x78] sm:$0xff]
      %v397 = vld [vmem:[%s356] sm:$0xff]
      %v398 = vld [vmem:[%s356 + $0x8] sm:$0xff]
      %v399 = vld [vmem:[%s356 + $0x10] sm:$0xff]
      %v400 = vld [vmem:[%s356 + $0x18] sm:$0xff]
      %v401 = vld [vmem:[%s359] sm:$0x1]
      %v403 = vlaneseq
      %v404 = vshrl.u32 %v403, 7
      %v405 = vsub.s32 0, %v404
      %v406 = vrot.slane %v401, %v405
      %vm408 = vcmask 261120
      %v410 = vsel %vm408, %v381, 0
      %v413 = vsel %vm408, %v382, 0
      %v416 = vsel %vm408, %v383, 0
      %v419 = vsel %vm408, %v384, 0
      %v422 = vsel %vm408, %v385, 0
      %v425 = vsel %vm408, %v386, 0
      %v428 = vsel %vm408, %v387, 0
      %v431 = vsel %vm408, %v388, 0
      %v434 = vsel %vm408, %v389, 0
      %v437 = vsel %vm408, %v390, 0
      %v440 = vsel %vm408, %v391, 0
      %v443 = vsel %vm408, %v392, 0
      %v446 = vsel %vm408, %v393, 0
      %v449 = vsel %vm408, %v394, 0
      %v452 = vsel %vm408, %v395, 0
      %v455 = vsel %vm408, %v396, 0
      %457 = vmatprep.subr.mxu0 0.0
      %458 = vmatpush1.msra.mxu0 0.0
      %459 = vmatprep.subr.mxu0 0.0
      %460 = vmatpush1.msra.mxu0 0.0
      %461 = vmatprep.subr.mxu0 0.0
      %462 = vmatpush1.msra.mxu0 0.0
      %463 = vmatprep.subr.mxu0 0.0
      %464 = vmatpush1.msra.mxu0 0.0
      %465 = vmatprep.subr.mxu0 0.0
      %466 = vmatpush1.msra.mxu0 0.0
      %467 = vmatprep.subr.mxu0 0.0
      %468 = vmatpush1.msra.mxu0 0.0
      %469 = vmatprep.subr.mxu0 0.0
      %470 = vmatpush1.msra.mxu0 0.0
      %471 = vmatprep.subr.mxu0 0.0
      %472 = vmatpush1.msra.mxu0 0.0
      %473 = vmatprep.subr.mxu0 0.0
      %474 = vmatpush1.msra.mxu0 0.0
      %475 = vmatprep.subr.mxu0 0.0
      %476 = vmatpush1.msra.mxu0 0.0
      %477 = vmatprep.subr.mxu0 0.0
      %478 = vmatpush1.msra.mxu0 0.0
      %479 = vmatprep.subr.mxu0 0.0
      %480 = vmatpush1.msra.mxu0 0.0
      %481 = vmatprep.subr.mxu0 0.0
      %482 = vmatpush1.msra.mxu0 %v400
      %483 = vmatprep.subr.mxu0 0.0
      %484 = vmatpush1.msra.mxu0 %v399
      %485 = vmatprep.subr.mxu0 0.0
      %486 = vmatpush1.msra.mxu0 %v398
      %487 = vmatprep.subr.mxu0 0.0
      %488 = vmatpush1.msra.mxu0 %v397
      %489 = vmatprep.subr.mxu0 0.0
      %490 = vmatpush2.msra.mxu0 0.0
      %491 = vmatprep.subr.mxu0 0.0
      %492 = vmatpush2.msra.mxu0 0.0
      %493 = vmatprep.subr.mxu0 0.0
      %494 = vmatpush2.msra.mxu0 0.0
      %495 = vmatprep.subr.mxu0 0.0
      %496 = vmatpush2.msra.mxu0 0.0
      %497 = vmatprep.subr.mxu0 0.0
      %498 = vmatpush2.msra.mxu0 0.0
      %499 = vmatprep.subr.mxu0 0.0
      %500 = vmatpush2.msra.mxu0 0.0
      %501 = vmatprep.subr.mxu0 0.0
      %502 = vmatpush2.msra.mxu0 0.0
      %503 = vmatprep.subr.mxu0 0.0
      %504 = vmatpush2.msra.mxu0 0.0
      %505 = vmatprep.subr.mxu0 0.0
      %506 = vmatpush2.msra.mxu0 0.0
      %507 = vmatprep.subr.mxu0 0.0
      %508 = vmatpush2.msra.mxu0 0.0
      %509 = vmatprep.subr.mxu0 0.0
      %510 = vmatpush2.msra.mxu0 0.0
      %511 = vmatprep.subr.mxu0 0.0
      %512 = vmatpush2.msra.mxu0 0.0
      %513 = vmatprep.subr.mxu0 0.0
      %514 = vmatpush2.msra.mxu0 0.0
      %515 = vmatprep.subr.mxu0 0.0
      %516 = vmatpush2.msra.mxu0 0.0
      %517 = vmatprep.subr.mxu0 0.0
      %518 = vmatpush2.msra.mxu0 0.0
      %519 = vmatprep.subr.mxu0 0.0
      %520 = vmatpush2.msra.mxu0 0.0
      %521 = vmatprep.mubr.f32.mxu0 0.0
      %522 = vmatmul.mubr.f32.gmra.mxu0 %v410
      %v523 = vpop.f32.mrf.mxu0
      %v524 = vadd.f32 %v406, %v523
      %v525 = vpop.f32.mrf.mxu0
      %526 = vmatprep.mubr.f32.mxu0 0.0
      %527 = vmatmul.mubr.f32.gmra.mxu0 %v413
      %v528 = vpop.f32.mrf.mxu0
      %v529 = vadd.f32 %v406, %v528
      %v530 = vpop.f32.mrf.mxu0
      %531 = vmatprep.mubr.f32.mxu0 0.0
      %532 = vmatmul.mubr.f32.gmra.mxu0 %v416
      %v533 = vpop.f32.mrf.mxu0
      %v534 = vadd.f32 %v406, %v533
      %v535 = vpop.f32.mrf.mxu0
      %536 = vmatprep.mubr.f32.mxu0 0.0
      %537 = vmatmul.mubr.f32.gmra.mxu0 %v419
      %v538 = vpop.f32.mrf.mxu0
      %v539 = vadd.f32 %v406, %v538
      %v540 = vpop.f32.mrf.mxu0
      %541 = vmatprep.mubr.f32.mxu0 0.0
      %542 = vmatmul.mubr.f32.gmra.mxu0 %v422
      %v543 = vpop.f32.mrf.mxu0
      %v544 = vadd.f32 %v406, %v543
      %v545 = vpop.f32.mrf.mxu0
      %546 = vmatprep.mubr.f32.mxu0 0.0
      %547 = vmatmul.mubr.f32.gmra.mxu0 %v425
      %v548 = vpop.f32.mrf.mxu0
      %v549 = vadd.f32 %v406, %v548
      %v550 = vpop.f32.mrf.mxu0
      %551 = vmatprep.mubr.f32.mxu0 0.0
      %552 = vmatmul.mubr.f32.gmra.mxu0 %v428
      %v553 = vpop.f32.mrf.mxu0
      %v554 = vadd.f32 %v406, %v553
      %v555 = vpop.f32.mrf.mxu0
      %556 = vmatprep.mubr.f32.mxu0 0.0
      %557 = vmatmul.mubr.f32.gmra.mxu0 %v431
      %v558 = vpop.f32.mrf.mxu0
      %v559 = vadd.f32 %v406, %v558
      %v560 = vpop.f32.mrf.mxu0
      %561 = vmatprep.mubr.f32.mxu0 0.0
      %562 = vmatmul.mubr.f32.gmra.mxu0 %v434
      %v563 = vpop.f32.mrf.mxu0
      %v564 = vadd.f32 %v406, %v563
      %v565 = vpop.f32.mrf.mxu0
      %566 = vmatprep.mubr.f32.mxu0 0.0
      %567 = vmatmul.mubr.f32.gmra.mxu0 %v437
      %v568 = vpop.f32.mrf.mxu0
      %v569 = vadd.f32 %v406, %v568
      %v570 = vpop.f32.mrf.mxu0
      %571 = vmatprep.mubr.f32.mxu0 0.0
      %572 = vmatmul.mubr.f32.gmra.mxu0 %v440
      %v573 = vpop.f32.mrf.mxu0
      %v574 = vadd.f32 %v406, %v573
      %v575 = vpop.f32.mrf.mxu0
      %576 = vmatprep.mubr.f32.mxu0 0.0
      %577 = vmatmul.mubr.f32.gmra.mxu0 %v443
      %v578 = vpop.f32.mrf.mxu0
      %v579 = vadd.f32 %v406, %v578
      %v580 = vpop.f32.mrf.mxu0
      %581 = vmatprep.mubr.f32.mxu0 0.0
      %582 = vmatmul.mubr.f32.gmra.mxu0 %v446
      %v583 = vpop.f32.mrf.mxu0
      %v584 = vadd.f32 %v406, %v583
      %v585 = vpop.f32.mrf.mxu0
      %586 = vmatprep.mubr.f32.mxu0 0.0
      %587 = vmatmul.mubr.f32.gmra.mxu0 %v449
      %v588 = vpop.f32.mrf.mxu0
      %v589 = vadd.f32 %v406, %v588
      %v590 = vpop.f32.mrf.mxu0
      %591 = vmatprep.mubr.f32.mxu0 0.0
      %592 = vmatmul.mubr.f32.gmra.mxu0 %v452
      %v593 = vpop.f32.mrf.mxu0
      %v594 = vadd.f32 %v406, %v593
      %v595 = vpop.f32.mrf.mxu0
      %596 = vmatprep.mubr.f32.mxu0 0.0
      %597 = vmatmul.mubr.f32.gmra.mxu0 %v455
      %v598 = vpop.f32.mrf.mxu0
      %v599 = vadd.f32 %v406, %v598
      %v600 = vpop.f32.mrf.mxu0
      %601 = vdwg.mxu0
      %v602 = vmax.f32 %v524, 0.0
      %v603 = vmax.f32 %v529, 0.0
      %v604 = vmax.f32 %v534, 0.0
      %v605 = vmax.f32 %v539, 0.0
      %v606 = vmax.f32 %v544, 0.0
      %v607 = vmax.f32 %v549, 0.0
      %v608 = vmax.f32 %v554, 0.0
      %v609 = vmax.f32 %v559, 0.0
      %v610 = vmax.f32 %v564, 0.0
      %v611 = vmax.f32 %v569, 0.0
      %v612 = vmax.f32 %v574, 0.0
      %v613 = vmax.f32 %v579, 0.0
      %v614 = vmax.f32 %v584, 0.0
      %v615 = vmax.f32 %v589, 0.0
      %v616 = vmax.f32 %v594, 0.0
      %v617 = vmax.f32 %v599, 0.0
      %v618 = vld [vmem:[%s364] sm:$0xff]
      %v619 = vld [vmem:[%s364 + $0x8] sm:$0xff]
      %v620 = vld [vmem:[%s364 + $0x10] sm:$0xff]
      %v621 = vld [vmem:[%s364 + $0x18] sm:$0xff]
      %v622 = vld [vmem:[%s367] sm:$0x1]
      %v624 = vlaneseq
      %v625 = vshrl.u32 %v624, 7
      %v626 = vsub.s32 0, %v625
      %v627 = vrot.slane %v622, %v626
      %v630 = vsel %vm408, %v602, 0
      %v633 = vsel %vm408, %v603, 0
      %v636 = vsel %vm408, %v604, 0
      %v639 = vsel %vm408, %v605, 0
      %v642 = vsel %vm408, %v606, 0
      %v645 = vsel %vm408, %v607, 0
      %v648 = vsel %vm408, %v608, 0
      %v651 = vsel %vm408, %v609, 0
      %v654 = vsel %vm408, %v610, 0
      %v657 = vsel %vm408, %v611, 0
      %v660 = vsel %vm408, %v612, 0
      %v663 = vsel %vm408, %v613, 0
      %v666 = vsel %vm408, %v614, 0
      %v669 = vsel %vm408, %v615, 0
      %v672 = vsel %vm408, %v616, 0
      %v675 = vsel %vm408, %v617, 0
      %677 = vmatprep.subr.mxu0 0.0
      %678 = vmatpush1.msra.mxu0 0.0
      %679 = vmatprep.subr.mxu0 0.0
      %680 = vmatpush1.msra.mxu0 0.0
      %681 = vmatprep.subr.mxu0 0.0
      %682 = vmatpush1.msra.mxu0 0.0
      %683 = vmatprep.subr.mxu0 0.0
      %684 = vmatpush1.msra.mxu0 0.0
      %685 = vmatprep.subr.mxu0 0.0
      %686 = vmatpush1.msra.mxu0 0.0
      %687 = vmatprep.subr.mxu0 0.0
      %688 = vmatpush1.msra.mxu0 0.0
      %689 = vmatprep.subr.mxu0 0.0
      %690 = vmatpush1.msra.mxu0 0.0
      %691 = vmatprep.subr.mxu0 0.0
      %692 = vmatpush1.msra.mxu0 0.0
      %693 = vmatprep.subr.mxu0 0.0
      %694 = vmatpush1.msra.mxu0 0.0
      %695 = vmatprep.subr.mxu0 0.0
      %696 = vmatpush1.msra.mxu0 0.0
      %697 = vmatprep.subr.mxu0 0.0
      %698 = vmatpush1.msra.mxu0 0.0
      %699 = vmatprep.subr.mxu0 0.0
      %700 = vmatpush1.msra.mxu0 0.0
      %701 = vmatprep.subr.mxu0 0.0
      %702 = vmatpush1.msra.mxu0 %v621
      %703 = vmatprep.subr.mxu0 0.0
      %704 = vmatpush1.msra.mxu0 %v620
      %705 = vmatprep.subr.mxu0 0.0
      %706 = vmatpush1.msra.mxu0 %v619
      %707 = vmatprep.subr.mxu0 0.0
      %708 = vmatpush1.msra.mxu0 %v618
      %709 = vmatprep.subr.mxu0 0.0
      %710 = vmatpush2.msra.mxu0 0.0
      %711 = vmatprep.subr.mxu0 0.0
      %712 = vmatpush2.msra.mxu0 0.0
      %713 = vmatprep.subr.mxu0 0.0
      %714 = vmatpush2.msra.mxu0 0.0
      %715 = vmatprep.subr.mxu0 0.0
      %716 = vmatpush2.msra.mxu0 0.0
      %717 = vmatprep.subr.mxu0 0.0
      %718 = vmatpush2.msra.mxu0 0.0
      %719 = vmatprep.subr.mxu0 0.0
      %720 = vmatpush2.msra.mxu0 0.0
      %721 = vmatprep.subr.mxu0 0.0
      %722 = vmatpush2.msra.mxu0 0.0
      %723 = vmatprep.subr.mxu0 0.0
      %724 = vmatpush2.msra.mxu0 0.0
      %725 = vmatprep.subr.mxu0 0.0
      %726 = vmatpush2.msra.mxu0 0.0
      %727 = vmatprep.subr.mxu0 0.0
      %728 = vmatpush2.msra.mxu0 0.0
      %729 = vmatprep.subr.mxu0 0.0
      %730 = vmatpush2.msra.mxu0 0.0
      %731 = vmatprep.subr.mxu0 0.0
      %732 = vmatpush2.msra.mxu0 0.0
      %733 = vmatprep.subr.mxu0 0.0
      %734 = vmatpush2.msra.mxu0 0.0
      %735 = vmatprep.subr.mxu0 0.0
      %736 = vmatpush2.msra.mxu0 0.0
      %737 = vmatprep.subr.mxu0 0.0
      %738 = vmatpush2.msra.mxu0 0.0
      %739 = vmatprep.subr.mxu0 0.0
      %740 = vmatpush2.msra.mxu0 0.0
      %741 = vmatprep.mubr.f32.mxu0 0.0
      %742 = vmatmul.mubr.f32.gmra.mxu0 %v630
      %v743 = vpop.f32.mrf.mxu0
      %v744 = vadd.f32 %v627, %v743
      %v745 = vpop.f32.mrf.mxu0
      %746 = vmatprep.mubr.f32.mxu0 0.0
      %747 = vmatmul.mubr.f32.gmra.mxu0 %v633
      %v748 = vpop.f32.mrf.mxu0
      %v749 = vadd.f32 %v627, %v748
      %v750 = vpop.f32.mrf.mxu0
      %751 = vmatprep.mubr.f32.mxu0 0.0
      %752 = vmatmul.mubr.f32.gmra.mxu0 %v636
      %v753 = vpop.f32.mrf.mxu0
      %v754 = vadd.f32 %v627, %v753
      %v755 = vpop.f32.mrf.mxu0
      %756 = vmatprep.mubr.f32.mxu0 0.0
      %757 = vmatmul.mubr.f32.gmra.mxu0 %v639
      %v758 = vpop.f32.mrf.mxu0
      %v759 = vadd.f32 %v627, %v758
      %v760 = vpop.f32.mrf.mxu0
      %761 = vmatprep.mubr.f32.mxu0 0.0
      %762 = vmatmul.mubr.f32.gmra.mxu0 %v642
      %v763 = vpop.f32.mrf.mxu0
      %v764 = vadd.f32 %v627, %v763
      %v765 = vpop.f32.mrf.mxu0
      %766 = vmatprep.mubr.f32.mxu0 0.0
      %767 = vmatmul.mubr.f32.gmra.mxu0 %v645
      %v768 = vpop.f32.mrf.mxu0
      %v769 = vadd.f32 %v627, %v768
      %v770 = vpop.f32.mrf.mxu0
      %771 = vmatprep.mubr.f32.mxu0 0.0
      %772 = vmatmul.mubr.f32.gmra.mxu0 %v648
      %v773 = vpop.f32.mrf.mxu0
      %v774 = vadd.f32 %v627, %v773
      %v775 = vpop.f32.mrf.mxu0
      %776 = vmatprep.mubr.f32.mxu0 0.0
      %777 = vmatmul.mubr.f32.gmra.mxu0 %v651
      %v778 = vpop.f32.mrf.mxu0
      %v779 = vadd.f32 %v627, %v778
      %v780 = vpop.f32.mrf.mxu0
      %781 = vmatprep.mubr.f32.mxu0 0.0
      %782 = vmatmul.mubr.f32.gmra.mxu0 %v654
      %v783 = vpop.f32.mrf.mxu0
      %v784 = vadd.f32 %v627, %v783
      %v785 = vpop.f32.mrf.mxu0
      %786 = vmatprep.mubr.f32.mxu0 0.0
      %787 = vmatmul.mubr.f32.gmra.mxu0 %v657
      %v788 = vpop.f32.mrf.mxu0
      %v789 = vadd.f32 %v627, %v788
      %v790 = vpop.f32.mrf.mxu0
      %791 = vmatprep.mubr.f32.mxu0 0.0
      %792 = vmatmul.mubr.f32.gmra.mxu0 %v660
      %v793 = vpop.f32.mrf.mxu0
      %v794 = vadd.f32 %v627, %v793
      %v795 = vpop.f32.mrf.mxu0
      %796 = vmatprep.mubr.f32.mxu0 0.0
      %797 = vmatmul.mubr.f32.gmra.mxu0 %v663
      %v798 = vpop.f32.mrf.mxu0
      %v799 = vadd.f32 %v627, %v798
      %v800 = vpop.f32.mrf.mxu0
      %801 = vmatprep.mubr.f32.mxu0 0.0
      %802 = vmatmul.mubr.f32.gmra.mxu0 %v666
      %v803 = vpop.f32.mrf.mxu0
      %v804 = vadd.f32 %v627, %v803
      %v805 = vpop.f32.mrf.mxu0
      %806 = vmatprep.mubr.f32.mxu0 0.0
      %807 = vmatmul.mubr.f32.gmra.mxu0 %v669
      %v808 = vpop.f32.mrf.mxu0
      %v809 = vadd.f32 %v627, %v808
      %v810 = vpop.f32.mrf.mxu0
      %811 = vmatprep.mubr.f32.mxu0 0.0
      %812 = vmatmul.mubr.f32.gmra.mxu0 %v672
      %v813 = vpop.f32.mrf.mxu0
      %v814 = vadd.f32 %v627, %v813
      %v815 = vpop.f32.mrf.mxu0
      %816 = vmatprep.mubr.f32.mxu0 0.0
      %817 = vmatmul.mubr.f32.gmra.mxu0 %v675
      %v818 = vpop.f32.mrf.mxu0
      %v819 = vadd.f32 %v627, %v818
      %v820 = vpop.f32.mrf.mxu0
      %821 = vdwg.mxu0
      %v822 = vmax.f32 %v744, 0.0
      %v823 = vmax.f32 %v749, 0.0
      %v824 = vmax.f32 %v754, 0.0
      %v825 = vmax.f32 %v759, 0.0
      %v826 = vmax.f32 %v764, 0.0
      %v827 = vmax.f32 %v769, 0.0
      %v828 = vmax.f32 %v774, 0.0
      %v829 = vmax.f32 %v779, 0.0
      %v830 = vmax.f32 %v784, 0.0
      %v831 = vmax.f32 %v789, 0.0
      %v832 = vmax.f32 %v794, 0.0
      %v833 = vmax.f32 %v799, 0.0
      %v834 = vmax.f32 %v804, 0.0
      %v835 = vmax.f32 %v809, 0.0
      %v836 = vmax.f32 %v814, 0.0
      %v837 = vmax.f32 %v819, 0.0
      %v838 = vld [vmem:[%s372] sm:$0xff]
      %v839 = vld [vmem:[%s372 + $0x8] sm:$0xff]
      %v840 = vld [vmem:[%s372 + $0x10] sm:$0xff]
      %v841 = vld [vmem:[%s372 + $0x18] sm:$0xff]
      %v842 = vld [vmem:[%s372 + $0x20] sm:$0xff]
      %v843 = vld [vmem:[%s372 + $0x28] sm:$0xff]
      %v844 = vld [vmem:[%s372 + $0x30] sm:$0xff]
      %v845 = vld [vmem:[%s372 + $0x38] sm:$0xff]
      %v846 = vld [vmem:[%s375] sm:$0x1]
      %v848 = vlaneseq
      %v849 = vshrl.u32 %v848, 7
      %v850 = vsub.s32 0, %v849
      %v851 = vrot.slane %v846, %v850
      %vm853 = vcmask 523264
      %v855 = vsel %vm853, %v822, 0
      %v858 = vsel %vm853, %v823, 0
      %v861 = vsel %vm853, %v824, 0
      %v864 = vsel %vm853, %v825, 0
      %v867 = vsel %vm853, %v826, 0
      %v870 = vsel %vm853, %v827, 0
      %v873 = vsel %vm853, %v828, 0
      %v876 = vsel %vm853, %v829, 0
      %v879 = vsel %vm853, %v830, 0
      %v882 = vsel %vm853, %v831, 0
      %v885 = vsel %vm853, %v832, 0
      %v888 = vsel %vm853, %v833, 0
      %v891 = vsel %vm853, %v834, 0
      %v894 = vsel %vm853, %v835, 0
      %v897 = vsel %vm853, %v836, 0
      %v900 = vsel %vm853, %v837, 0
      %902 = vmatprep.subr.mxu0 0.0
      %903 = vmatpush1.msra.mxu0 0.0
      %904 = vmatprep.subr.mxu0 0.0
      %905 = vmatpush1.msra.mxu0 0.0
      %906 = vmatprep.subr.mxu0 0.0
      %907 = vmatpush1.msra.mxu0 0.0
      %908 = vmatprep.subr.mxu0 0.0
      %909 = vmatpush1.msra.mxu0 0.0
      %910 = vmatprep.subr.mxu0 0.0
      %911 = vmatpush1.msra.mxu0 0.0
      %912 = vmatprep.subr.mxu0 0.0
      %913 = vmatpush1.msra.mxu0 0.0
      %914 = vmatprep.subr.mxu0 0.0
      %915 = vmatpush1.msra.mxu0 0.0
      %916 = vmatprep.subr.mxu0 0.0
      %917 = vmatpush1.msra.mxu0 0.0
      %918 = vmatprep.subr.mxu0 0.0
      %919 = vmatpush1.msra.mxu0 %v845
      %920 = vmatprep.subr.mxu0 0.0
      %921 = vmatpush1.msra.mxu0 %v844
      %922 = vmatprep.subr.mxu0 0.0
      %923 = vmatpush1.msra.mxu0 %v843
      %924 = vmatprep.subr.mxu0 0.0
      %925 = vmatpush1.msra.mxu0 %v842
      %926 = vmatprep.subr.mxu0 0.0
      %927 = vmatpush1.msra.mxu0 %v841
      %928 = vmatprep.subr.mxu0 0.0
      %929 = vmatpush1.msra.mxu0 %v840
      %930 = vmatprep.subr.mxu0 0.0
      %931 = vmatpush1.msra.mxu0 %v839
      %932 = vmatprep.subr.mxu0 0.0
      %933 = vmatpush1.msra.mxu0 %v838
      %934 = vmatprep.subr.mxu0 0.0
      %935 = vmatpush2.msra.mxu0 0.0
      %936 = vmatprep.subr.mxu0 0.0
      %937 = vmatpush2.msra.mxu0 0.0
      %938 = vmatprep.subr.mxu0 0.0
      %939 = vmatpush2.msra.mxu0 0.0
      %940 = vmatprep.subr.mxu0 0.0
      %941 = vmatpush2.msra.mxu0 0.0
      %942 = vmatprep.subr.mxu0 0.0
      %943 = vmatpush2.msra.mxu0 0.0
      %944 = vmatprep.subr.mxu0 0.0
      %945 = vmatpush2.msra.mxu0 0.0
      %946 = vmatprep.subr.mxu0 0.0
      %947 = vmatpush2.msra.mxu0 0.0
      %948 = vmatprep.subr.mxu0 0.0
      %949 = vmatpush2.msra.mxu0 0.0
      %950 = vmatprep.subr.mxu0 0.0
      %951 = vmatpush2.msra.mxu0 0.0
      %952 = vmatprep.subr.mxu0 0.0
      %953 = vmatpush2.msra.mxu0 0.0
      %954 = vmatprep.subr.mxu0 0.0
      %955 = vmatpush2.msra.mxu0 0.0
      %956 = vmatprep.subr.mxu0 0.0
      %957 = vmatpush2.msra.mxu0 0.0
      %958 = vmatprep.subr.mxu0 0.0
      %959 = vmatpush2.msra.mxu0 0.0
      %960 = vmatprep.subr.mxu0 0.0
      %961 = vmatpush2.msra.mxu0 0.0
      %962 = vmatprep.subr.mxu0 0.0
      %963 = vmatpush2.msra.mxu0 0.0
      %964 = vmatprep.subr.mxu0 0.0
      %965 = vmatpush2.msra.mxu0 0.0
      %966 = vmatprep.mubr.f32.mxu0 0.0
      %967 = vmatmul.mubr.f32.gmra.mxu0 %v855
      %v968 = vpop.f32.mrf.mxu0
      %v969 = vadd.f32 %v851, %v968
      %v970 = vpop.f32.mrf.mxu0
      %971 = vmatprep.mubr.f32.mxu0 0.0
      %972 = vmatmul.mubr.f32.gmra.mxu0 %v858
      %v973 = vpop.f32.mrf.mxu0
      %v974 = vadd.f32 %v851, %v973
      %v975 = vpop.f32.mrf.mxu0
      %976 = vmatprep.mubr.f32.mxu0 0.0
      %977 = vmatmul.mubr.f32.gmra.mxu0 %v861
      %v978 = vpop.f32.mrf.mxu0
      %v979 = vadd.f32 %v851, %v978
      %v980 = vpop.f32.mrf.mxu0
      %981 = vmatprep.mubr.f32.mxu0 0.0
      %982 = vmatmul.mubr.f32.gmra.mxu0 %v864
      %v983 = vpop.f32.mrf.mxu0
      %v984 = vadd.f32 %v851, %v983
      %v985 = vpop.f32.mrf.mxu0
      %986 = vmatprep.mubr.f32.mxu0 0.0
      %987 = vmatmul.mubr.f32.gmra.mxu0 %v867
      %v988 = vpop.f32.mrf.mxu0
      %v989 = vadd.f32 %v851, %v988
      %v990 = vpop.f32.mrf.mxu0
      %991 = vmatprep.mubr.f32.mxu0 0.0
      %992 = vmatmul.mubr.f32.gmra.mxu0 %v870
      %v993 = vpop.f32.mrf.mxu0
      %v994 = vadd.f32 %v851, %v993
      %v995 = vpop.f32.mrf.mxu0
      %996 = vmatprep.mubr.f32.mxu0 0.0
      %997 = vmatmul.mubr.f32.gmra.mxu0 %v873
      %v998 = vpop.f32.mrf.mxu0
      %v999 = vadd.f32 %v851, %v998
      %v1000 = vpop.f32.mrf.mxu0
      %1001 = vmatprep.mubr.f32.mxu0 0.0
      %1002 = vmatmul.mubr.f32.gmra.mxu0 %v876
      %v1003 = vpop.f32.mrf.mxu0
      %v1004 = vadd.f32 %v851, %v1003
      %v1005 = vpop.f32.mrf.mxu0
      %1006 = vmatprep.mubr.f32.mxu0 0.0
      %1007 = vmatmul.mubr.f32.gmra.mxu0 %v879
      %v1008 = vpop.f32.mrf.mxu0
      %v1009 = vadd.f32 %v851, %v1008
      %v1010 = vpop.f32.mrf.mxu0
      %1011 = vmatprep.mubr.f32.mxu0 0.0
      %1012 = vmatmul.mubr.f32.gmra.mxu0 %v882
      %v1013 = vpop.f32.mrf.mxu0
      %v1014 = vadd.f32 %v851, %v1013
      %v1015 = vpop.f32.mrf.mxu0
      %1016 = vmatprep.mubr.f32.mxu0 0.0
      %1017 = vmatmul.mubr.f32.gmra.mxu0 %v885
      %v1018 = vpop.f32.mrf.mxu0
      %v1019 = vadd.f32 %v851, %v1018
      %v1020 = vpop.f32.mrf.mxu0
      %1021 = vmatprep.mubr.f32.mxu0 0.0
      %1022 = vmatmul.mubr.f32.gmra.mxu0 %v888
      %v1023 = vpop.f32.mrf.mxu0
      %v1024 = vadd.f32 %v851, %v1023
      %v1025 = vpop.f32.mrf.mxu0
      %1026 = vmatprep.mubr.f32.mxu0 0.0
      %1027 = vmatmul.mubr.f32.gmra.mxu0 %v891
      %v1028 = vpop.f32.mrf.mxu0
      %v1029 = vadd.f32 %v851, %v1028
      %v1030 = vpop.f32.mrf.mxu0
      %1031 = vmatprep.mubr.f32.mxu0 0.0
      %1032 = vmatmul.mubr.f32.gmra.mxu0 %v894
      %v1033 = vpop.f32.mrf.mxu0
      %v1034 = vadd.f32 %v851, %v1033
      %v1035 = vpop.f32.mrf.mxu0
      %1036 = vmatprep.mubr.f32.mxu0 0.0
      %1037 = vmatmul.mubr.f32.gmra.mxu0 %v897
      %v1038 = vpop.f32.mrf.mxu0
      %v1039 = vadd.f32 %v851, %v1038
      %v1040 = vpop.f32.mrf.mxu0
      %1041 = vmatprep.mubr.f32.mxu0 0.0
      %1042 = vmatmul.mubr.f32.gmra.mxu0 %v900
      %v1043 = vpop.f32.mrf.mxu0
      %v1044 = vadd.f32 %v851, %v1043
      %v1045 = vpop.f32.mrf.mxu0
      %1046 = vdwg.mxu0
      %v1047 = vlaneseq
      %v1048 = vand.u32 %v1047, 127
      %vm1049 = vcmp.lt.s32.totalorder %v1048, 4
      %v1050 = vsel %vm1049, %v969, -1e+30
      %v1051 = vsel %vm1049, %v974, -1e+30
      %v1052 = vsel %vm1049, %v979, -1e+30
      %v1053 = vsel %vm1049, %v984, -1e+30
      %v1054 = vsel %vm1049, %v989, -1e+30
      %v1055 = vsel %vm1049, %v994, -1e+30
      %v1056 = vsel %vm1049, %v999, -1e+30
      %v1057 = vsel %vm1049, %v1004, -1e+30
      %v1058 = vsel %vm1049, %v1009, -1e+30
      %v1059 = vsel %vm1049, %v1014, -1e+30
      %v1060 = vsel %vm1049, %v1019, -1e+30
      %v1061 = vsel %vm1049, %v1024, -1e+30
      %v1062 = vsel %vm1049, %v1029, -1e+30
      %v1063 = vsel %vm1049, %v1034, -1e+30
      %v1064 = vsel %vm1049, %v1039, -1e+30
      %v1065 = vsel %vm1049, %v1044, -1e+30
      %vm1066 = vcmask 39936
      %v1067 = vsel %vm1066, %v1050, -inf
      %1068 = vmax.xlane.f32.xlu0 %v1067
      %v1069 = vpop.xlane.xlu0 %1068
      %v1070 = vsel %vm1066, %v1051, -inf
      %1071 = vmax.xlane.f32.xlu0 %v1070
      %v1072 = vpop.xlane.xlu0 %1071
      %v1073 = vsel %vm1066, %v1052, -inf
      %1074 = vmax.xlane.f32.xlu0 %v1073
      %v1075 = vpop.xlane.xlu0 %1074
      %v1076 = vsel %vm1066, %v1053, -inf
      %1077 = vmax.xlane.f32.xlu0 %v1076
      %v1078 = vpop.xlane.xlu0 %1077
      %v1079 = vsel %vm1066, %v1054, -inf
      %1080 = vmax.xlane.f32.xlu0 %v1079
      %v1081 = vpop.xlane.xlu0 %1080
      %v1082 = vsel %vm1066, %v1055, -inf
      %1083 = vmax.xlane.f32.xlu0 %v1082
      %v1084 = vpop.xlane.xlu0 %1083
      %v1085 = vsel %vm1066, %v1056, -inf
      %1086 = vmax.xlane.f32.xlu0 %v1085
      %v1087 = vpop.xlane.xlu0 %1086
      %v1088 = vsel %vm1066, %v1057, -inf
      %1089 = vmax.xlane.f32.xlu0 %v1088
      %v1090 = vpop.xlane.xlu0 %1089
      %v1091 = vsel %vm1066, %v1058, -inf
      %1092 = vmax.xlane.f32.xlu0 %v1091
      %v1093 = vpop.xlane.xlu0 %1092
      %v1094 = vsel %vm1066, %v1059, -inf
      %1095 = vmax.xlane.f32.xlu0 %v1094
      %v1096 = vpop.xlane.xlu0 %1095
      %v1097 = vsel %vm1066, %v1060, -inf
      %1098 = vmax.xlane.f32.xlu0 %v1097
      %v1099 = vpop.xlane.xlu0 %1098
      %v1100 = vsel %vm1066, %v1061, -inf
      %1101 = vmax.xlane.f32.xlu0 %v1100
      %v1102 = vpop.xlane.xlu0 %1101
      %v1103 = vsel %vm1066, %v1062, -inf
      %1104 = vmax.xlane.f32.xlu0 %v1103
      %v1105 = vpop.xlane.xlu0 %1104
      %v1106 = vsel %vm1066, %v1063, -inf
      %1107 = vmax.xlane.f32.xlu0 %v1106
      %v1108 = vpop.xlane.xlu0 %1107
      %v1109 = vsel %vm1066, %v1064, -inf
      %1110 = vmax.xlane.f32.xlu0 %v1109
      %v1111 = vpop.xlane.xlu0 %1110
      %v1112 = vsel %vm1066, %v1065, -inf
      %1113 = vmax.xlane.f32.xlu0 %v1112
      %v1114 = vpop.xlane.xlu0 %1113
      %v1115 = vsub.f32 %v1050, %v1069
      %v1116 = vsub.f32 %v1051, %v1072
      %v1117 = vsub.f32 %v1052, %v1075
      %v1118 = vsub.f32 %v1053, %v1078
      %v1119 = vsub.f32 %v1054, %v1081
      %v1120 = vsub.f32 %v1055, %v1084
      %v1121 = vsub.f32 %v1056, %v1087
      %v1122 = vsub.f32 %v1057, %v1090
      %v1123 = vsub.f32 %v1058, %v1093
      %v1124 = vsub.f32 %v1059, %v1096
      %v1125 = vsub.f32 %v1060, %v1099
      %v1126 = vsub.f32 %v1061, %v1102
      %v1127 = vsub.f32 %v1062, %v1105
      %v1128 = vsub.f32 %v1063, %v1108
      %v1129 = vsub.f32 %v1064, %v1111
      %v1130 = vsub.f32 %v1065, %v1114
      %v1131 = vmul.f32 %v1115, 1.442695
      %v1132 = vpow.pop %v1131
      %v1133 = vmul.f32 %v1116, 1.442695
      %v1134 = vpow.pop %v1133
      %v1135 = vmul.f32 %v1117, 1.442695
      %v1136 = vpow.pop %v1135
      %v1137 = vmul.f32 %v1118, 1.442695
      %v1138 = vpow.pop %v1137
      %v1139 = vmul.f32 %v1119, 1.442695
      %v1140 = vpow.pop %v1139
      %v1141 = vmul.f32 %v1120, 1.442695
      %v1142 = vpow.pop %v1141
      %v1143 = vmul.f32 %v1121, 1.442695
      %v1144 = vpow.pop %v1143
      %v1145 = vmul.f32 %v1122, 1.442695
      %v1146 = vpow.pop %v1145
      %v1147 = vmul.f32 %v1123, 1.442695
      %v1148 = vpow.pop %v1147
      %v1149 = vmul.f32 %v1124, 1.442695
      %v1150 = vpow.pop %v1149
      %v1151 = vmul.f32 %v1125, 1.442695
      %v1152 = vpow.pop %v1151
      %v1153 = vmul.f32 %v1126, 1.442695
      %v1154 = vpow.pop %v1153
      %v1155 = vmul.f32 %v1127, 1.442695
      %v1156 = vpow.pop %v1155
      %v1157 = vmul.f32 %v1128, 1.442695
      %v1158 = vpow.pop %v1157
      %v1159 = vmul.f32 %v1129, 1.442695
      %v1160 = vpow.pop %v1159
      %v1161 = vmul.f32 %v1130, 1.442695
      %v1162 = vpow.pop %v1161
      %v1163 = vsel %vm1066, %v1132, 0.0
      %1164 = vadd.xlane.f32.xlu0 %v1163
      %v1165 = vpop.xlane.xlu0 %1164
      %v1166 = vsel %vm1066, %v1134, 0.0
      %1167 = vadd.xlane.f32.xlu0 %v1166
      %v1168 = vpop.xlane.xlu0 %1167
      %v1169 = vsel %vm1066, %v1136, 0.0
      %1170 = vadd.xlane.f32.xlu0 %v1169
      %v1171 = vpop.xlane.xlu0 %1170
      %v1172 = vsel %vm1066, %v1138, 0.0
      %1173 = vadd.xlane.f32.xlu0 %v1172
      %v1174 = vpop.xlane.xlu0 %1173
      %v1175 = vsel %vm1066, %v1140, 0.0
      %1176 = vadd.xlane.f32.xlu0 %v1175
      %v1177 = vpop.xlane.xlu0 %1176
      %v1178 = vsel %vm1066, %v1142, 0.0
      %1179 = vadd.xlane.f32.xlu0 %v1178
      %v1180 = vpop.xlane.xlu0 %1179
      %v1181 = vsel %vm1066, %v1144, 0.0
      %1182 = vadd.xlane.f32.xlu0 %v1181
      %v1183 = vpop.xlane.xlu0 %1182
      %v1184 = vsel %vm1066, %v1146, 0.0
      %1185 = vadd.xlane.f32.xlu0 %v1184
      %v1186 = vpop.xlane.xlu0 %1185
      %v1187 = vsel %vm1066, %v1148, 0.0
      %1188 = vadd.xlane.f32.xlu0 %v1187
      %v1189 = vpop.xlane.xlu0 %1188
      %v1190 = vsel %vm1066, %v1150, 0.0
      %1191 = vadd.xlane.f32.xlu0 %v1190
      %v1192 = vpop.xlane.xlu0 %1191
      %v1193 = vsel %vm1066, %v1152, 0.0
      %1194 = vadd.xlane.f32.xlu0 %v1193
      %v1195 = vpop.xlane.xlu0 %1194
      %v1196 = vsel %vm1066, %v1154, 0.0
      %1197 = vadd.xlane.f32.xlu0 %v1196
      %v1198 = vpop.xlane.xlu0 %1197
      %v1199 = vsel %vm1066, %v1156, 0.0
      %1200 = vadd.xlane.f32.xlu0 %v1199
      %v1201 = vpop.xlane.xlu0 %1200
      %v1202 = vsel %vm1066, %v1158, 0.0
      %1203 = vadd.xlane.f32.xlu0 %v1202
      %v1204 = vpop.xlane.xlu0 %1203
      %v1205 = vsel %vm1066, %v1160, 0.0
      %1206 = vadd.xlane.f32.xlu0 %v1205
      %v1207 = vpop.xlane.xlu0 %1206
      %v1208 = vsel %vm1066, %v1162, 0.0
      %1209 = vadd.xlane.f32.xlu0 %v1208
      %v1210 = vpop.xlane.xlu0 %1209
      %v1211 = vrcp.pop %v1165
      %v1212 = vrcp.pop %v1168
      %v1213 = vrcp.pop %v1171
      %v1214 = vrcp.pop %v1174
      %v1215 = vrcp.pop %v1177
      %v1216 = vrcp.pop %v1180
      %v1217 = vrcp.pop %v1183
      %v1218 = vrcp.pop %v1186
      %v1219 = vrcp.pop %v1189
      %v1220 = vrcp.pop %v1192
      %v1221 = vrcp.pop %v1195
      %v1222 = vrcp.pop %v1198
      %v1223 = vrcp.pop %v1201
      %v1224 = vrcp.pop %v1204
      %v1225 = vrcp.pop %v1207
      %v1226 = vrcp.pop %v1210
      %v1227 = vmul.f32 %v1132, %v1211
      %v1228 = vmul.f32 %v1134, %v1212
      %v1229 = vmul.f32 %v1136, %v1213
      %v1230 = vmul.f32 %v1138, %v1214
      %v1231 = vmul.f32 %v1140, %v1215
      %v1232 = vmul.f32 %v1142, %v1216
      %v1233 = vmul.f32 %v1144, %v1217
      %v1234 = vmul.f32 %v1146, %v1218
      %v1235 = vmul.f32 %v1148, %v1219
      %v1236 = vmul.f32 %v1150, %v1220
      %v1237 = vmul.f32 %v1152, %v1221
      %v1238 = vmul.f32 %v1154, %v1222
      %v1239 = vmul.f32 %v1156, %v1223
      %v1240 = vmul.f32 %v1158, %v1224
      %v1241 = vmul.f32 %v1160, %v1225
      %v1242 = vmul.f32 %v1162, %v1226
      %v1243 = vsel %vm1049, %v1227, %v969
      %v1244 = vsel %vm1049, %v1228, %v974
      %v1245 = vsel %vm1049, %v1229, %v979
      %v1246 = vsel %vm1049, %v1230, %v984
      %v1247 = vsel %vm1049, %v1231, %v989
      %v1248 = vsel %vm1049, %v1232, %v994
      %v1249 = vsel %vm1049, %v1233, %v999
      %v1250 = vsel %vm1049, %v1234, %v1004
      %v1251 = vsel %vm1049, %v1235, %v1009
      %v1252 = vsel %vm1049, %v1236, %v1014
      %v1253 = vsel %vm1049, %v1237, %v1019
      %v1254 = vsel %vm1049, %v1238, %v1024
      %v1255 = vsel %vm1049, %v1239, %v1029
      %v1256 = vsel %vm1049, %v1240, %v1034
      %v1257 = vsel %vm1049, %v1241, %v1039
      %v1258 = vsel %vm1049, %v1242, %v1044
      %1259 = vst.msk [vmem:[%s380] sm:$0xff] %vm1066, %v1243
      %1260 = vst.msk [vmem:[%s380 + $0x8] sm:$0xff] %vm1066, %v1244
      %1261 = vst.msk [vmem:[%s380 + $0x10] sm:$0xff] %vm1066, %v1245
      %1262 = vst.msk [vmem:[%s380 + $0x18] sm:$0xff] %vm1066, %v1246
      %1263 = vst.msk [vmem:[%s380 + $0x20] sm:$0xff] %vm1066, %v1247
      %1264 = vst.msk [vmem:[%s380 + $0x28] sm:$0xff] %vm1066, %v1248
      %1265 = vst.msk [vmem:[%s380 + $0x30] sm:$0xff] %vm1066, %v1249
      %1266 = vst.msk [vmem:[%s380 + $0x38] sm:$0xff] %vm1066, %v1250
      %1267 = vst.msk [vmem:[%s380 + $0x40] sm:$0xff] %vm1066, %v1251
      %1268 = vst.msk [vmem:[%s380 + $0x48] sm:$0xff] %vm1066, %v1252
      %1269 = vst.msk [vmem:[%s380 + $0x50] sm:$0xff] %vm1066, %v1253
      %1270 = vst.msk [vmem:[%s380 + $0x58] sm:$0xff] %vm1066, %v1254
      %1271 = vst.msk [vmem:[%s380 + $0x60] sm:$0xff] %vm1066, %v1255
      %1272 = vst.msk [vmem:[%s380 + $0x68] sm:$0xff] %vm1066, %v1256
      %1273 = vst.msk [vmem:[%s380 + $0x70] sm:$0xff] %vm1066, %v1257
      %1274 = vst.msk [vmem:[%s380 + $0x78] sm:$0xff] %vm1066, %v1258
      %p1275 = scmp.lt.s32.totalorder %s18, 3
      %s1276 = scalar_select %p1275, %s18, 3
      %s1277 = smul.addr %s1276, 16
      %s1278 = smul.addr %s1277, 8
      %s1279 = scalar_lea.vmem %s7, %s1278
      // Predicated region
      $region49: #{tpu_custom_call.1} parent=47 // pred_check
        %p1280 = pneg %p218
      $region50: #{tpu_custom_call.1} parent=47 // pred_check_branch
        %1282 = sbr.rel (%p1280) target = $region52
      $region51: #{tpu_custom_call.1} parent=47 // pred_region
        _
      $region52: #{tpu_custom_call.1} parent=47 // pred_fallthru
        _
    $region48: #{tpu_custom_call.1} parent=5 // pred_fallthru
      _
    %p1283 = scmp.le.s32.totalorder 2, %s13
    // Predicated region
    $region53: #{tpu_custom_call.1} parent=5 // pred_check
      %p1284 = pneg %p1283
    $region54: #{tpu_custom_call.1} parent=5 // pred_check_branch
      %1286 = sbr.rel (%p1284) target = $region56
    $region55: #{tpu_custom_call.1} parent=5 // pred_region
      %s1287 = ssub.s32 %s13, 2
      // Predicated region
      $region57: #{tpu_custom_call.1} parent=55 // pred_check
        %p1288 = pneg %p224
      $region58: #{tpu_custom_call.1} parent=55 // pred_check_branch
        %1290 = sbr.rel (%p1288) target = $region60
      $region59: #{tpu_custom_call.1} parent=55 // pred_region
        %p1291 = scmp.lt.s32.totalorder %s19, 3
        %s1292 = scalar_select %p1291, %s19, 3
        %s1293 = smul.addr %s1292, 16
        %s1294 = smul.addr %s1293, 8
        %s1295 = scalar_lea.vmem %s7, %s1294
      $region60: #{tpu_custom_call.1} parent=55 // pred_fallthru
        _
    $region56: #{tpu_custom_call.1} parent=5 // pred_fallthru
      _
  $region6: #{tpu_custom_call.1} parent=0 // loop_footer
    %s17 = sadd.s32 1, %s13
  $region7: #{tpu_custom_call.1} parent=0 // loop_footer_branch
    %12 = sbr.rel target = $region3
  $region8: #{tpu_custom_call.1} parent=0 // loop_exit
    _

</llo_original>
